<compile_context>
chip_gen: v6e
topology: v6e:2x2x1
jax: 0.10.0
libtpu: 0.0.40
codegen_flags: <defaults>
</compile_context>

<pallas_src>
import functools

import jax
import jax.numpy as jnp
from jax.experimental import pallas as pl
from jax.experimental.pallas import tpu as pltpu


_ALIGN = 16      # row alignment of the packed-param buffer; valid for f32 (8) and bf16 (16)
_TB_MAX = 4096   # keeps f32 intermediates (tb*128*4 B each) under v5e's 16 MiB scoped VMEM


def _round_up(x, m):
    return ((x + m - 1) // m) * m


def _mlp_kernel(x_ref, p_ref, o_ref, *, in_pad, c, out_dim):
    """One batch tile: 3 fused matmuls (MXU, f32 accumulation) + bias/ReLU (VPU).

    p_ref packs all weights & biases in one lane-dense (rows, c) buffer:
      rows [0, in_pad)                    : W1  (in_pad, c)
      rows [in_pad, in_pad + c)           : W2  (c, c)
      rows [in_pad + c, in_pad + 2c)      : W3  (c, c)
      rows [in_pad + 2c, in_pad + 2c + 16): biases (row 0 = b1, row 1 = b2, row 2 = b3)
    All row offsets are multiples of 16, so static slices are tile-aligned for
    both f32 and bf16 packed layouts.
    """
    dt = p_ref.dtype                                   # compute dtype (bf16 or f32)
    x = x_ref[...].astype(dt)                          # (tb, in_pad)
    w1 = p_ref[0:in_pad, :]                            # (in_pad, c)
    w2 = p_ref[in_pad:in_pad + c, :]                   # (c, c)
    w3 = p_ref[in_pad + c:in_pad + 2 * c, :]           # (c, c)
    b = p_ref[in_pad + 2 * c:in_pad + 2 * c + 16, :].astype(jnp.float32)
    b1, b2, b3 = b[0:1, :], b[1:2, :], b[2:3, :]

    h1 = jnp.maximum(jnp.dot(x, w1, preferred_element_type=jnp.float32) + b1, 0.0)
    h2 = jnp.maximum(
        jnp.dot(h1.astype(dt), w2, preferred_element_type=jnp.float32) + b2, 0.0)
    y = jnp.dot(h2.astype(dt), w3, preferred_element_type=jnp.float32) + b3
    # Narrow, exact store: only the true q-value columns leave the kernel.
    o_ref[...] = y[:, :out_dim].astype(o_ref.dtype)


def pack_params(params, dtype=jnp.bfloat16):
    """Pack (w1,b1,w2,b2,w3,b3) into one zero-padded, lane-dense buffer.

    Call once per optimizer step; keep the result resident for the hot path.
    """
    w1, b1, w2, b2, w3, b3 = params
    in_dim, n_hidden = w1.shape
    out_dim = w3.shape[1]

    in_pad = _round_up(in_dim, _ALIGN)                  # sublane-aligned rows
    c = _round_up(max(n_hidden, out_dim), 128)          # lane multiple
    rows = in_pad + 2 * c + _ALIGN

    p = jnp.zeros((rows, c), jnp.float32)
    p = p.at[0:in_dim, 0:n_hidden].set(w1)
    p = p.at[in_pad:in_pad + n_hidden, 0:n_hidden].set(w2)
    p = p.at[in_pad + c:in_pad + c + n_hidden, 0:out_dim].set(w3)
    boff = in_pad + 2 * c
    p = p.at[boff, 0:n_hidden].set(b1.reshape(-1))
    p = p.at[boff + 1, 0:n_hidden].set(b2.reshape(-1))
    p = p.at[boff + 2, 0:out_dim].set(b3.reshape(-1))
    return p.astype(dtype), (in_dim, n_hidden, out_dim, in_pad, c)


@functools.partial(
    jax.jit, static_argnames=("in_dim", "out_dim", "in_pad", "c", "block_batch"))
def mlp_forward_packed(x, packed, *, in_dim, out_dim, in_pad, c, block_batch=2048):
    """Fused 3-layer MLP over a batch grid with pinned packed params (jitted hot path)."""
    x = x.astype(jnp.float32)
    batch = x.shape[0]
    b8 = _round_up(batch, 8)

    # Batch tile: multiple of 8, big (per-step overhead ~0.35 us), capped for VMEM.
    tb = min(_round_up(block_batch, 8), b8, _TB_MAX)
    # v7x has 2 TensorCores: for large batches ensure the "parallel" batch grid
    # has at least 2 steps so both cores get work (no effect on v5e/v6e).
    if b8 >= 256:
        tb = min(tb, _round_up(pl.cdiv(b8, 2), 8))
    b_pad = _round_up(batch, tb)

    # Zero-pad batch to a tile multiple and features to in_pad (exact: padded
    # columns hit zero weight rows; padded batch rows are sliced away). Under
    # jit this pad fuses with the kernel's input instead of a separate HBM pass.
    if b_pad == batch and in_pad == in_dim:
        x_p = x
    else:
        x_p = jnp.zeros((b_pad, in_pad), jnp.float32).at[:batch, :in_dim].set(x)

    kernel = functools.partial(_mlp_kernel, in_pad=in_pad, c=c, out_dim=out_dim)

    out = pl.pallas_call(
        kernel,
        out_shape=jax.ShapeDtypeStruct((b_pad, out_dim), jnp.float32),
        grid=(b_pad // tb,),
        in_specs=[
            # activations: one (tb, in_pad) tile per grid step, auto double-buffered
            pl.BlockSpec((tb, in_pad), lambda i: (i, 0)),
            # packed params: constant index_map -> VMEM-resident across all steps
            pl.BlockSpec(packed.shape, lambda i: (0, 0)),
        ],
        # narrow output block: out_dim equals the full last dim -> legal, and it
        # removes the 32x padded-slab HBM write amplification
        out_specs=pl.BlockSpec((tb, out_dim), lambda i: (i, 0)),
        compiler_params=pltpu.CompilerParams(
            # batch axis is embarrassingly parallel -> shards across v7x's 2 TCs
            dimension_semantics=("parallel",),
        ),
    )(x_p, packed)

    return out[:batch] if b_pad != batch else out


def mlp_forward(x, params, *, block_batch=2048, dtype=jnp.bfloat16):
    """Convenience wrapper: packs params then runs the Pallas forward pass.

    Do NOT use on a per-step hot path (it re-packs every call); use
    pack_params() once + mlp_forward_packed() instead.
    """
    packed, (in_dim, _n_hidden, out_dim, in_pad, c) = pack_params(params, dtype=dtype)
    return mlp_forward_packed(
        x, packed, in_dim=in_dim, out_dim=out_dim, in_pad=in_pad, c=c,
        block_batch=block_batch,
    )


def init_params(key, input_shape, output_shape, n_hidden=20):
    """Deterministic init mirroring nn.Linear's default U(-1/sqrt(fan_in), 1/sqrt(fan_in))."""
    def linear(key, fan_in, fan_out):
        kw, kb = jax.random.split(key)
        bound = 1.0 / jnp.sqrt(fan_in)
        w = jax.random.uniform(kw, (fan_in, fan_out), jnp.float32, -bound, bound)
        b = jax.random.uniform(kb, (1, fan_out), jnp.float32, -bound, bound)
        return w, b

    k1, k2, k3 = jax.random.split(key, 3)
    w1, b1 = linear(k1, input_shape, n_hidden)
    w2, b2 = linear(k2, n_hidden, n_hidden)
    w3, b3 = linear(k3, n_hidden, output_shape)
    return (w1, b1, w2, b2, w3, b3)


def reference_forward(x, params):
    w1, b1, w2, b2, w3, b3 = params
    h1 = jnp.maximum(x @ w1 + b1, 0.0)
    h2 = jnp.maximum(h1 @ w2 + b2, 0.0)
    return h2 @ w3 + b3


if __name__ == "__main__":
    # LunarLander-style dims: 8 observations -> 4 q-values, hidden=20.
    batch, input_shape, output_shape, n_hidden = 2, 8, 4, 20

    key = jax.random.PRNGKey(0)
    kx, kp, kx2 = jax.random.split(key, 3)
    x = jax.random.normal(kx, (batch, input_shape), jnp.float32)
    params = init_params(kp, input_shape, output_shape, n_hidden)

    # 1) Exactness check: f32 packed params, small RL-rollout-sized batch.
    q_f32 = jax.block_until_ready(mlp_forward(x, params, dtype=jnp.float32))
    q_ref = reference_forward(x, params)
    assert q_f32.shape == (batch, output_shape)
    assert jnp.allclose(q_f32, q_ref, atol=1e-5, rtol=1e-5), "mismatch vs JAX reference (f32)"

    # 2) Perf path: bf16 MXU operands + f32 accumulation (looser tolerance).
    q_bf16 = jax.block_until_ready(mlp_forward(x, params))  # dtype defaults to bf16
    assert jnp.allclose(q_bf16, q_ref, atol=3e-2, rtol=3e-2), "mismatch vs JAX reference (bf16)"

    # 3) Larger, ragged batch through the jitted packed hot path: exercises the
    #    multi-step batch grid, batch padding, and the narrow output store.
    packed, (in_dim, _nh, out_dim, in_pad, c) = pack_params(params)  # once per "optimizer step"
    x_big = jax.random.normal(kx2, (200, input_shape), jnp.float32)
    q_big = jax.block_until_ready(
        mlp_forward_packed(x_big, packed, in_dim=in_dim, out_dim=out_dim,
                           in_pad=in_pad, c=c, block_batch=64))
    q_big_ref = reference_forward(x_big, params)
    assert q_big.shape == (200, output_shape)
    assert jnp.allclose(q_big, q_big_ref, atol=3e-2, rtol=3e-2), "mismatch vs JAX reference (batched)"

    print("KERNEL_OK")
</pallas_src>

<mosaic_0001>
module attributes {stable_mosaic.version = 11 : i64} {
  func.func @_mlp_kernel(%arg0: i32, %arg1: memref<8x16xf32, #tpu.memory_space<vmem>>, %arg2: memref<288x128xf32, #tpu.memory_space<vmem>>, %arg3: memref<8x4xf32, #tpu.memory_space<vmem>>) attributes {dimension_semantics = [#tpu.dimension_semantics<parallel>], iteration_bounds = array<i64: 1>, scalar_prefetch = 0 : i64, scratch_operands = 0 : i64, tpu.core_type = #tpu.core_type<tc>, window_params = [{transform_indices = @transform_0, window_bounds = array<i64: 8, 16>}, {pipeline_mode = #tpu.pipeline_mode<synchronous>, transform_indices = @transform_1, window_bounds = array<i64: 288, 128>}, {transform_indices = @transform_2, window_bounds = array<i64: 8, 4>}]} {
    %c0 = arith.constant 0 : index
    %c0_0 = arith.constant 0 : index
    %0 = vector.load %arg1[%c0, %c0_0] : memref<8x16xf32, #tpu.memory_space<vmem>>, vector<8x16xf32>
    %c0_1 = arith.constant 0 : index
    %c0_2 = arith.constant 0 : index
    %1 = vector.load %arg2[%c0_1, %c0_2] : memref<288x128xf32, #tpu.memory_space<vmem>>, vector<16x128xf32>
    %c16 = arith.constant 16 : index
    %c0_3 = arith.constant 0 : index
    %2 = vector.load %arg2[%c16, %c0_3] : memref<288x128xf32, #tpu.memory_space<vmem>>, vector<128x128xf32>
    %c144 = arith.constant 144 : index
    %c0_4 = arith.constant 0 : index
    %3 = vector.load %arg2[%c144, %c0_4] : memref<288x128xf32, #tpu.memory_space<vmem>>, vector<128x128xf32>
    %c272 = arith.constant 272 : index
    %c0_5 = arith.constant 0 : index
    %4 = vector.load %arg2[%c272, %c0_5] : memref<288x128xf32, #tpu.memory_space<vmem>>, vector<16x128xf32>
    %5 = vector.extract_strided_slice %4 {offsets = [0, 0], sizes = [1, 128], strides = [1, 1]} : vector<16x128xf32> to vector<1x128xf32>
    %6 = vector.extract_strided_slice %4 {offsets = [1, 0], sizes = [1, 128], strides = [1, 1]} : vector<16x128xf32> to vector<1x128xf32>
    %7 = vector.extract_strided_slice %4 {offsets = [2, 0], sizes = [1, 128], strides = [1, 1]} : vector<16x128xf32> to vector<1x128xf32>
    %cst = arith.constant dense<0.000000e+00> : vector<8x128xf32>
    %8 = tpu.matmul %0, %1, %cst {dimension_numbers = #tpu.dot_dimension_numbers<[1], [0], [0], [1], [0, 0, 1, 1], [], []>} : vector<8x16xf32>, vector<16x128xf32>, vector<8x128xf32> -> vector<8x128xf32>
    %9 = vector.broadcast %5 : vector<1x128xf32> to vector<8x128xf32>
    %10 = arith.addf %8, %9 : vector<8x128xf32>
    %cst_6 = arith.constant 0.000000e+00 : f32
    %11 = vector.broadcast %cst_6 : f32 to vector<8x128xf32>
    %12 = arith.maximumf %10, %11 : vector<8x128xf32>
    %cst_7 = arith.constant dense<0.000000e+00> : vector<8x128xf32>
    %13 = tpu.matmul %12, %2, %cst_7 {dimension_numbers = #tpu.dot_dimension_numbers<[1], [0], [0], [1], [0, 0, 1, 1], [], []>} : vector<8x128xf32>, vector<128x128xf32>, vector<8x128xf32> -> vector<8x128xf32>
    %14 = vector.broadcast %6 : vector<1x128xf32> to vector<8x128xf32>
    %15 = arith.addf %13, %14 : vector<8x128xf32>
    %cst_8 = arith.constant 0.000000e+00 : f32
    %16 = vector.broadcast %cst_8 : f32 to vector<8x128xf32>
    %17 = arith.maximumf %15, %16 : vector<8x128xf32>
    %cst_9 = arith.constant dense<0.000000e+00> : vector<8x128xf32>
    %18 = tpu.matmul %17, %3, %cst_9 {dimension_numbers = #tpu.dot_dimension_numbers<[1], [0], [0], [1], [0, 0, 1, 1], [], []>} : vector<8x128xf32>, vector<128x128xf32>, vector<8x128xf32> -> vector<8x128xf32>
    %19 = vector.broadcast %7 : vector<1x128xf32> to vector<8x128xf32>
    %20 = arith.addf %18, %19 : vector<8x128xf32>
    %21 = vector.extract_strided_slice %20 {offsets = [0, 0], sizes = [8, 4], strides = [1, 1]} : vector<8x128xf32> to vector<8x4xf32>
    %c0_10 = arith.constant 0 : index
    %c0_11 = arith.constant 0 : index
    %22 = vector.load %arg3[%c0_10, %c0_11] : memref<8x4xf32, #tpu.memory_space<vmem>>, vector<8x4xf32>
    tpu.vector_store %arg3[%c0_10, %c0_11], %21 {strides = array<i32>} : memref<8x4xf32, #tpu.memory_space<vmem>>, vector<8x4xf32>,
    return
  }
  func.func @transform_0(%arg0: i32) -> (i32, i32) {
    %c0_i32 = arith.constant 0 : i32
    %c0_i32_0 = arith.constant 0 : i32
    return %arg0, %c0_i32 : i32, i32
  }
  func.func @transform_1(%arg0: i32) -> (i32, i32) {
    %c0_i32 = arith.constant 0 : i32
    %c0_i32_0 = arith.constant 0 : i32
    %c0_i32_1 = arith.constant 0 : i32
    return %c0_i32, %c0_i32_0 : i32, i32
  }
  func.func @transform_2(%arg0: i32) -> (i32, i32) {
    %c0_i32 = arith.constant 0 : i32
    %c0_i32_0 = arith.constant 0 : i32
    return %arg0, %c0_i32 : i32, i32
  }
}

</mosaic_0001>

<llo_original>
// kernel: mlp_forward_packed.1
$region0: #{mlp_forward_packed.1}
  #allocation0 [shape = 'u32[]', space=smem, size = 0x4, offset = 0x4, fixed_abs, tag = 'smem constant byte address 0x4 - core index']
  #allocation1 [shape = 'u32[144,128]{1,0:T(1,128)}', space=vmem, size = 0x12000, scoped, tag = 'internal scratch']
  %s0 = inlined_call_operand.vmem [shape: f32[8,16], index: 0, kind: input, shape index: {}]
  %s1 = inlined_call_operand.hbm [shape: f32[288,128], index: 1, kind: input, shape index: {}]
  %s2 = inlined_call_operand.vmem [shape: f32[8,4], index: 2, kind: output, shape index: {}]
  %s3 = sld [smem:[#allocation0]]
  $region22: #{mlp_forward_packed.1} parent=0
    _
  %s5 = ssub.s32 1, %s3
  %s6 = scalar_select 0, %s5, %s3
  $region1: #{mlp_forward_packed.1} parent=0
    #allocation2 [shape = 'u8[147456]{0}', space=vmem, size = 0x24000, scoped, tag = 'input window, operand 1, single buffered']
    #allocation3 [shape = 's32[1]{0}', space=sflag, size = 0x4, scoped, tag = 'scoped memory for mlp_forward_packed.1']
    %7 = vsyncpa [#allocation3], 0
    // Predicated region
    $region2: #{mlp_forward_packed.1} parent=1 // pred_check
      _
    $region3: #{mlp_forward_packed.1} parent=1 // pred_check_branch
      %9 = sbr.rel (0) target = $region5
    $region4: #{mlp_forward_packed.1} parent=1 // pred_region
      _
    $region5: #{mlp_forward_packed.1} parent=1 // pred_fallthru
      _
    // Predicated region
    $region6: #{mlp_forward_packed.1} parent=1 // pred_check
      _
    $region7: #{mlp_forward_packed.1} parent=1 // pred_check_branch
      %11 = sbr.rel (0) target = $region9
    $region8: #{mlp_forward_packed.1} parent=1 // pred_region
      %s13 = ssub.s32 4608, 4608
      %14 = vsyncadd [#allocation3], %s13
      %s15 = sshll.u32 [#allocation2], 4
      %s16 = int_to_ptr.vmem [resolvable:$true] %s15
      %21 = dma.hbm_to_vmem [thread:$0]  %s1, 4608, %s16, [#allocation3], 128, 128, 8
    $region9: #{mlp_forward_packed.1} parent=1 // pred_fallthru
      _
    // Predicated region
    $region10: #{mlp_forward_packed.1} parent=1 // pred_check
      _
    $region11: #{mlp_forward_packed.1} parent=1 // pred_check_branch
      %23 = sbr.rel (0) target = $region13
    $region12: #{mlp_forward_packed.1} parent=1 // pred_region
      %24 = dma.done [#allocation3], 4608
    $region13: #{mlp_forward_packed.1} parent=1 // pred_fallthru
      _
    %v25 = vld [vmem:[%s0] sm:$0xff]
    %v26 = vld [vmem:[#allocation2] sm:$0xff]
    %v27 = vld [vmem:[#allocation2 + $0x8] sm:$0xff]
    %v28 = vld [vmem:[#allocation2 + $0x10] sm:$0xff]
    %v29 = vld [vmem:[#allocation2 + $0x18] sm:$0xff]
    %v30 = vld [vmem:[#allocation2 + $0x20] sm:$0xff]
    %v31 = vld [vmem:[#allocation2 + $0x28] sm:$0xff]
    %v32 = vld [vmem:[#allocation2 + $0x30] sm:$0xff]
    %v33 = vld [vmem:[#allocation2 + $0x38] sm:$0xff]
    %v34 = vld [vmem:[#allocation2 + $0x40] sm:$0xff]
    %v35 = vld [vmem:[#allocation2 + $0x48] sm:$0xff]
    %v36 = vld [vmem:[#allocation2 + $0x50] sm:$0xff]
    %v37 = vld [vmem:[#allocation2 + $0x58] sm:$0xff]
    %v38 = vld [vmem:[#allocation2 + $0x60] sm:$0xff]
    %v39 = vld [vmem:[#allocation2 + $0x68] sm:$0xff]
    %v40 = vld [vmem:[#allocation2 + $0x70] sm:$0xff]
    %v41 = vld [vmem:[#allocation2 + $0x78] sm:$0xff]
    %v42 = vld [vmem:[#allocation2 + $0x80] sm:$0xff]
    %v43 = vld [vmem:[#allocation2 + $0x88] sm:$0xff]
    %v44 = vld [vmem:[#allocation2 + $0x90] sm:$0xff]
    %v45 = vld [vmem:[#allocation2 + $0x98] sm:$0xff]
    %v46 = vld [vmem:[#allocation2 + $0xa0] sm:$0xff]
    %v47 = vld [vmem:[#allocation2 + $0xa8] sm:$0xff]
    %v48 = vld [vmem:[#allocation2 + $0xb0] sm:$0xff]
    %v49 = vld [vmem:[#allocation2 + $0xb8] sm:$0xff]
    %v50 = vld [vmem:[#allocation2 + $0xc0] sm:$0xff]
    %v51 = vld [vmem:[#allocation2 + $0xc8] sm:$0xff]
    %v52 = vld [vmem:[#allocation2 + $0xd0] sm:$0xff]
    %v53 = vld [vmem:[#allocation2 + $0xd8] sm:$0xff]
    %v54 = vld [vmem:[#allocation2 + $0xe0] sm:$0xff]
    %v55 = vld [vmem:[#allocation2 + $0xe8] sm:$0xff]
    %v56 = vld [vmem:[#allocation2 + $0xf0] sm:$0xff]
    %v57 = vld [vmem:[#allocation2 + $0xf8] sm:$0xff]
    %v58 = vld [vmem:[#allocation2 + $0x100] sm:$0xff]
    %v59 = vld [vmem:[#allocation2 + $0x108] sm:$0xff]
    %v60 = vld [vmem:[#allocation2 + $0x110] sm:$0xff]
    %v61 = vlaneseq
    %v62 = vshrl.u32 %v61, 7
    %v63 = vsub.s32 0, %v62
    %v64 = vrot.slane %v60, %v63
    %vm65 = vcmask 130048
    %v67 = vsel %vm65, %v25, 0
    %69 = vmatprep.subr.mxu0 0.0
    %70 = vmatpush1.msra.mxu0 0.0
    %71 = vmatprep.subr.mxu0 0.0
    %72 = vmatpush1.msra.mxu0 0.0
    %73 = vmatprep.subr.mxu0 0.0
    %74 = vmatpush1.msra.mxu0 0.0
    %75 = vmatprep.subr.mxu0 0.0
    %76 = vmatpush1.msra.mxu0 0.0
    %77 = vmatprep.subr.mxu0 0.0
    %78 = vmatpush1.msra.mxu0 0.0
    %79 = vmatprep.subr.mxu0 0.0
    %80 = vmatpush1.msra.mxu0 0.0
    %81 = vmatprep.subr.mxu0 0.0
    %82 = vmatpush1.msra.mxu0 0.0
    %83 = vmatprep.subr.mxu0 0.0
    %84 = vmatpush1.msra.mxu0 0.0
    %85 = vmatprep.subr.mxu0 0.0
    %86 = vmatpush1.msra.mxu0 0.0
    %87 = vmatprep.subr.mxu0 0.0
    %88 = vmatpush1.msra.mxu0 0.0
    %89 = vmatprep.subr.mxu0 0.0
    %90 = vmatpush1.msra.mxu0 0.0
    %91 = vmatprep.subr.mxu0 0.0
    %92 = vmatpush1.msra.mxu0 0.0
    %93 = vmatprep.subr.mxu0 0.0
    %94 = vmatpush1.msra.mxu0 0.0
    %95 = vmatprep.subr.mxu0 0.0
    %96 = vmatpush1.msra.mxu0 0.0
    %97 = vmatprep.subr.mxu0 0.0
    %98 = vmatpush1.msra.mxu0 %v27
    %99 = vmatprep.subr.mxu0 0.0
    %100 = vmatpush1.msra.mxu0 %v26
    %101 = vmatprep.subr.mxu0 0.0
    %102 = vmatpush2.msra.mxu0 0.0
    %103 = vmatprep.subr.mxu0 0.0
    %104 = vmatpush2.msra.mxu0 0.0
    %105 = vmatprep.subr.mxu0 0.0
    %106 = vmatpush2.msra.mxu0 0.0
    %107 = vmatprep.subr.mxu0 0.0
    %108 = vmatpush2.msra.mxu0 0.0
    %109 = vmatprep.subr.mxu0 0.0
    %110 = vmatpush2.msra.mxu0 0.0
    %111 = vmatprep.subr.mxu0 0.0
    %112 = vmatpush2.msra.mxu0 0.0
    %113 = vmatprep.subr.mxu0 0.0
    %114 = vmatpush2.msra.mxu0 0.0
    %115 = vmatprep.subr.mxu0 0.0
    %116 = vmatpush2.msra.mxu0 0.0
    %117 = vmatprep.subr.mxu0 0.0
    %118 = vmatpush2.msra.mxu0 0.0
    %119 = vmatprep.subr.mxu0 0.0
    %120 = vmatpush2.msra.mxu0 0.0
    %121 = vmatprep.subr.mxu0 0.0
    %122 = vmatpush2.msra.mxu0 0.0
    %123 = vmatprep.subr.mxu0 0.0
    %124 = vmatpush2.msra.mxu0 0.0
    %125 = vmatprep.subr.mxu0 0.0
    %126 = vmatpush2.msra.mxu0 0.0
    %127 = vmatprep.subr.mxu0 0.0
    %128 = vmatpush2.msra.mxu0 0.0
    %129 = vmatprep.subr.mxu0 0.0
    %130 = vmatpush2.msra.mxu0 0.0
    %131 = vmatprep.subr.mxu0 0.0
    %132 = vmatpush2.msra.mxu0 0.0
    %133 = vmatprep.mubr.f32.mxu0 0.0
    %134 = vmatmul.mubr.f32.gmra.mxu0 %v67
    %v135 = vpop.f32.mrf.mxu0
    %v136 = vadd.f32 %v64, %v135
    %v137 = vpop.f32.mrf.mxu0
    %138 = vdwg.mxu0
    %v139 = vmax.f32 %v136, 0.0
    %v140 = vlaneseq
    %v141 = vshrl.u32 %v140, 7
    %v142 = vsub.s32 1, %v141
    %v143 = vrot.slane %v60, %v142
    %144 = vmatprep.subr.mxu0 0.0
    %145 = vmatpush1.msra.mxu0 %v43
    %146 = vmatprep.subr.mxu0 0.0
    %147 = vmatpush1.msra.mxu0 %v42
    %148 = vmatprep.subr.mxu0 0.0
    %149 = vmatpush1.msra.mxu0 %v41
    %150 = vmatprep.subr.mxu0 0.0
    %151 = vmatpush1.msra.mxu0 %v40
    %152 = vmatprep.subr.mxu0 0.0
    %153 = vmatpush1.msra.mxu0 %v39
    %154 = vmatprep.subr.mxu0 0.0
    %155 = vmatpush1.msra.mxu0 %v38
    %156 = vmatprep.subr.mxu0 0.0
    %157 = vmatpush1.msra.mxu0 %v37
    %158 = vmatprep.subr.mxu0 0.0
    %159 = vmatpush1.msra.mxu0 %v36
    %160 = vmatprep.subr.mxu0 0.0
    %161 = vmatpush1.msra.mxu0 %v35
    %162 = vmatprep.subr.mxu0 0.0
    %163 = vmatpush1.msra.mxu0 %v34
    %164 = vmatprep.subr.mxu0 0.0
    %165 = vmatpush1.msra.mxu0 %v33
    %166 = vmatprep.subr.mxu0 0.0
    %167 = vmatpush1.msra.mxu0 %v32
    %168 = vmatprep.subr.mxu0 0.0
    %169 = vmatpush1.msra.mxu0 %v31
    %170 = vmatprep.subr.mxu0 0.0
    %171 = vmatpush1.msra.mxu0 %v30
    %172 = vmatprep.subr.mxu0 0.0
    %173 = vmatpush1.msra.mxu0 %v29
    %174 = vmatprep.subr.mxu0 0.0
    %175 = vmatpush1.msra.mxu0 %v28
    %176 = vmatprep.subr.mxu0 0.0
    %177 = vmatpush2.msra.mxu0 0.0
    %178 = vmatprep.subr.mxu0 0.0
    %179 = vmatpush2.msra.mxu0 0.0
    %180 = vmatprep.subr.mxu0 0.0
    %181 = vmatpush2.msra.mxu0 0.0
    %182 = vmatprep.subr.mxu0 0.0
    %183 = vmatpush2.msra.mxu0 0.0
    %184 = vmatprep.subr.mxu0 0.0
    %185 = vmatpush2.msra.mxu0 0.0
    %186 = vmatprep.subr.mxu0 0.0
    %187 = vmatpush2.msra.mxu0 0.0
    %188 = vmatprep.subr.mxu0 0.0
    %189 = vmatpush2.msra.mxu0 0.0
    %190 = vmatprep.subr.mxu0 0.0
    %191 = vmatpush2.msra.mxu0 0.0
    %192 = vmatprep.subr.mxu0 0.0
    %193 = vmatpush2.msra.mxu0 0.0
    %194 = vmatprep.subr.mxu0 0.0
    %195 = vmatpush2.msra.mxu0 0.0
    %196 = vmatprep.subr.mxu0 0.0
    %197 = vmatpush2.msra.mxu0 0.0
    %198 = vmatprep.subr.mxu0 0.0
    %199 = vmatpush2.msra.mxu0 0.0
    %200 = vmatprep.subr.mxu0 0.0
    %201 = vmatpush2.msra.mxu0 0.0
    %202 = vmatprep.subr.mxu0 0.0
    %203 = vmatpush2.msra.mxu0 0.0
    %204 = vmatprep.subr.mxu0 0.0
    %205 = vmatpush2.msra.mxu0 0.0
    %206 = vmatprep.subr.mxu0 0.0
    %207 = vmatpush2.msra.mxu0 0.0
    %208 = vmatprep.mubr.f32.mxu0 0.0
    %209 = vmatmul.mubr.f32.gmra.mxu0 %v139
    %v210 = vpop.f32.mrf.mxu0
    %v211 = vadd.f32 %v143, %v210
    %v212 = vpop.f32.mrf.mxu0
    %213 = vdwg.mxu0
    %v214 = vmax.f32 %v211, 0.0
    %v215 = vlaneseq
    %v216 = vshrl.u32 %v215, 7
    %v217 = vsub.s32 2, %v216
    %v218 = vrot.slane %v60, %v217
    %219 = vmatprep.subr.mxu0 0.0
    %220 = vmatpush1.msra.mxu0 %v59
    %221 = vmatprep.subr.mxu0 0.0
    %222 = vmatpush1.msra.mxu0 %v58
    %223 = vmatprep.subr.mxu0 0.0
    %224 = vmatpush1.msra.mxu0 %v57
    %225 = vmatprep.subr.mxu0 0.0
    %226 = vmatpush1.msra.mxu0 %v56
    %227 = vmatprep.subr.mxu0 0.0
    %228 = vmatpush1.msra.mxu0 %v55
    %229 = vmatprep.subr.mxu0 0.0
    %230 = vmatpush1.msra.mxu0 %v54
    %231 = vmatprep.subr.mxu0 0.0
    %232 = vmatpush1.msra.mxu0 %v53
    %233 = vmatprep.subr.mxu0 0.0
    %234 = vmatpush1.msra.mxu0 %v52
    %235 = vmatprep.subr.mxu0 0.0
    %236 = vmatpush1.msra.mxu0 %v51
    %237 = vmatprep.subr.mxu0 0.0
    %238 = vmatpush1.msra.mxu0 %v50
    %239 = vmatprep.subr.mxu0 0.0
    %240 = vmatpush1.msra.mxu0 %v49
    %241 = vmatprep.subr.mxu0 0.0
    %242 = vmatpush1.msra.mxu0 %v48
    %243 = vmatprep.subr.mxu0 0.0
    %244 = vmatpush1.msra.mxu0 %v47
    %245 = vmatprep.subr.mxu0 0.0
    %246 = vmatpush1.msra.mxu0 %v46
    %247 = vmatprep.subr.mxu0 0.0
    %248 = vmatpush1.msra.mxu0 %v45
    %249 = vmatprep.subr.mxu0 0.0
    %250 = vmatpush1.msra.mxu0 %v44
    %251 = vmatprep.subr.mxu0 0.0
    %252 = vmatpush2.msra.mxu0 0.0
    %253 = vmatprep.subr.mxu0 0.0
    %254 = vmatpush2.msra.mxu0 0.0
    %255 = vmatprep.subr.mxu0 0.0
    %256 = vmatpush2.msra.mxu0 0.0
    %257 = vmatprep.subr.mxu0 0.0
    %258 = vmatpush2.msra.mxu0 0.0
    %259 = vmatprep.subr.mxu0 0.0
    %260 = vmatpush2.msra.mxu0 0.0
    %261 = vmatprep.subr.mxu0 0.0
    %262 = vmatpush2.msra.mxu0 0.0
    %263 = vmatprep.subr.mxu0 0.0
    %264 = vmatpush2.msra.mxu0 0.0
    %265 = vmatprep.subr.mxu0 0.0
    %266 = vmatpush2.msra.mxu0 0.0
    %267 = vmatprep.subr.mxu0 0.0
    %268 = vmatpush2.msra.mxu0 0.0
    %269 = vmatprep.subr.mxu0 0.0
    %270 = vmatpush2.msra.mxu0 0.0
    %271 = vmatprep.subr.mxu0 0.0
    %272 = vmatpush2.msra.mxu0 0.0
    %273 = vmatprep.subr.mxu0 0.0
    %274 = vmatpush2.msra.mxu0 0.0
    %275 = vmatprep.subr.mxu0 0.0
    %276 = vmatpush2.msra.mxu0 0.0
    %277 = vmatprep.subr.mxu0 0.0
    %278 = vmatpush2.msra.mxu0 0.0
    %279 = vmatprep.subr.mxu0 0.0
    %280 = vmatpush2.msra.mxu0 0.0
    %281 = vmatprep.subr.mxu0 0.0
    %282 = vmatpush2.msra.mxu0 0.0
    %283 = vmatprep.mubr.f32.mxu0 0.0
    %284 = vmatmul.mubr.f32.gmra.mxu0 %v214
    %v285 = vpop.f32.mrf.mxu0
    %v286 = vadd.f32 %v218, %v285
    %v287 = vpop.f32.mrf.mxu0
    %288 = vdwg.mxu0
    %vm289 = vcmask 31744
    %290 = vst.msk [vmem:[%s2] sm:$0xff] %vm289, %v286
    // Predicated region
    $region14: #{mlp_forward_packed.1} parent=1 // pred_check
      _
    $region15: #{mlp_forward_packed.1} parent=1 // pred_check_branch
      %292 = sbr.rel (0) target = $region17
    $region16: #{mlp_forward_packed.1} parent=1 // pred_region
      _
    $region17: #{mlp_forward_packed.1} parent=1 // pred_fallthru
      _
    // Predicated region
    $region18: #{mlp_forward_packed.1} parent=1 // pred_check
      _
    $region19: #{mlp_forward_packed.1} parent=1 // pred_check_branch
      %294 = sbr.rel (0) target = $region21
    $region20: #{mlp_forward_packed.1} parent=1 // pred_region
      _
    $region21: #{mlp_forward_packed.1} parent=1 // pred_fallthru
      _
    %295 = vsyncpa [#allocation3], 1

</llo_original>
